<compile_context>
chip_gen: v6e
topology: v6e:2x2x1
jax: 0.10.0
libtpu: 0.0.40
codegen_flags: <defaults>
</compile_context>

<pallas_src>
import functools

import jax
import jax.numpy as jnp
from jax.experimental import pallas as pl
from jax.experimental.pallas import tpu as pltpu

LEAKY_SLOPE = 0.01   # F.leaky_relu default
BN_EPS = 1e-5        # nn.BatchNorm1d default
PADDED_IN = 128      # lane-width padding of the fused input


def _model_kernel(x_ref, ids_ref, w_in_ref, w_mid_ref, vec_ref, out_ref, *,
                  raw_dim, n_lang_rows, n_hour_rows, n_day_rows):
    batch, padded_in = x_ref.shape
    hidden = w_mid_ref.shape[-1]
    bias_row = raw_dim + n_lang_rows + n_hour_rows + n_day_rows

    # Per-layer packed params, read as [1, H] Ref slices at their sublane offsets.
    b2, b3, b4 = vec_ref[0:1, :], vec_ref[1:2, :], vec_ref[2:3, :]
    g1, g2, g3, g4 = vec_ref[3:4, :], vec_ref[4:5, :], vec_ref[5:6, :], vec_ref[6:7, :]
    be1, be2 = vec_ref[7:8, :], vec_ref[8:9, :]
    be3, be4 = vec_ref[9:10, :], vec_ref[10:11, :]
    b_out = vec_ref[11:12, :]

    def mm(a, w):
        # bf16 MXU operands (single-pass matmul), f32 accumulate.
        return jnp.dot(a.astype(jnp.bfloat16), w, preferred_element_type=jnp.float32)

    def leaky_relu(h):
        return jnp.where(h >= 0, h, LEAKY_SLOPE * h)

    # Hoisted constant reused by all four BN layers.
    ones_b = jnp.full((1, batch), 1.0 / batch, dtype=jnp.float32)

    def batch_norm(h, g, be):
        # Training-mode BatchNorm1d with batch statistics.  Both axis-0 (sublane)
        # reductions go through the MXU in a single [1,B]@[B,2H] matmul that yields
        # mean(h) and mean(h*h) together; elementwise math stays f32.
        stats = jnp.dot(ones_b, jnp.concatenate([h, h * h], axis=1),
                        preferred_element_type=jnp.float32)          # [1, 2H]
        mu = stats[:, :hidden]
        var = stats[:, hidden:] - mu * mu                            # one-pass var (f32)
        s = g * jax.lax.rsqrt(var + BN_EPS)                          # EUP rsqrt
        return h * s + (be - mu * s)                                 # folded FMA

    # --- fused input: raw features + 3-hot embedding selector + bias row, one matmul
    ids = ids_ref[...]                                               # [B, 4] int32
    rows = jax.lax.broadcasted_iota(jnp.int32, (batch, padded_in), 1)
    hot = ((rows == ids[:, 0:1] + raw_dim)
           | (rows == ids[:, 1:2] + raw_dim + n_lang_rows)
           | (rows == ids[:, 2:3] + raw_dim + n_lang_rows + n_hour_rows)
           | (rows == bias_row)).astype(jnp.float32)
    x_full = (x_ref[...] + hot).astype(jnp.bfloat16)                 # disjoint lanes

    z = jnp.dot(x_full, w_in_ref[...], preferred_element_type=jnp.float32)  # [B, 2H]
    x_res = batch_norm(leaky_relu(z[:, :hidden]), g1, be1)   # bn1(leaky(l1(x_cat)))
    x_proj = z[:, hidden:]                                    # projection(x_cat)

    h = batch_norm(leaky_relu(mm(x_res, w_mid_ref[0]) + b2 + x_proj), g2, be2)
    h = batch_norm(leaky_relu(mm(h, w_mid_ref[1]) + b3 + x_proj), g3, be3)
    h = batch_norm(leaky_relu(mm(h, w_mid_ref[2]) + b4 + x_res), g4, be4)

    # l_output folded into w_mid[3] (zero-padded to [H, H]); keep the first 4 lanes.
    out = mm(h, w_mid_ref[3]) + b_out                                # [B, H]
    out_ref[...] = out[:, :4]    # masked store: 128 B at this size, negligible


def model_forward(x_raw, language, twitt_hour, twitt_day, params, *,
                  n_lang_rows, n_hour_rows=24, n_day_rows=31, padded_in=PADDED_IN):
    """x_raw: [B, raw_dim] f32; language/twitt_hour/twitt_day: [B] int."""
    batch, raw_dim = x_raw.shape
    x_pad = jnp.pad(x_raw.astype(jnp.float32), ((0, 0), (0, padded_in - raw_dim)))
    ids = jnp.stack([language, twitt_hour, twitt_day,
                     jnp.zeros_like(language)], axis=1).astype(jnp.int32)   # [B, 4]
    vmem = pl.BlockSpec(memory_space=pltpu.MemorySpace.VMEM)
    kernel = functools.partial(_model_kernel, raw_dim=raw_dim,
                               n_lang_rows=n_lang_rows, n_hour_rows=n_hour_rows,
                               n_day_rows=n_day_rows)
    return pl.pallas_call(
        kernel,
        out_shape=jax.ShapeDtypeStruct((batch, 4), jnp.float32),
        in_specs=[vmem] * 5,
        out_specs=vmem,
    )(x_pad, ids, params["w_in"], params["w_mid"], params["vec"])


def init_raw_params(key, input_dim, hidden_size):
    """Synthetic parameters matching the shapes / defaults of the PyTorch module."""
    keys = jax.random.split(key, 12)

    def lin(kw, kb, n_in, n_out):
        bound = 1.0 / jnp.sqrt(n_in)
        w = jax.random.uniform(kw, (n_in, n_out), jnp.float32, -bound, bound)  # [in, out]
        b = jax.random.uniform(kb, (1, n_out), jnp.float32, -bound, bound)
        return w, b

    p = {}
    p["wp"], p["bp"] = lin(keys[0], keys[1], input_dim, hidden_size)    # projection
    p["w1"], p["b1"] = lin(keys[2], keys[3], input_dim, hidden_size)    # l1
    p["w2"], p["b2"] = lin(keys[4], keys[5], hidden_size, hidden_size)  # l2
    p["w3"], p["b3"] = lin(keys[6], keys[7], hidden_size, hidden_size)  # l3
    p["w4"], p["b4"] = lin(keys[8], keys[9], hidden_size, hidden_size)  # l4
    p["wo"], p["bo"] = lin(keys[10], keys[11], hidden_size, 4)          # l_output
    for i in range(1, 5):  # BatchNorm affine defaults: gamma=1, beta=0
        p[f"g{i}"] = jnp.ones((1, hidden_size), jnp.float32)
        p[f"be{i}"] = jnp.zeros((1, hidden_size), jnp.float32)
    return p


def init_embeddings(key, num_languages, embedding_size):
    k1, k2, k3 = jax.random.split(key, 3)
    std = 0.01  # trunc_normal_ std in the reference
    lang = std * jax.random.truncated_normal(
        k1, -2.0, 2.0, (num_languages + 1, embedding_size), jnp.float32)
    hour = std * jax.random.truncated_normal(k2, -2.0, 2.0, (24, embedding_size), jnp.float32)
    day = std * jax.random.truncated_normal(k3, -2.0, 2.0, (31, embedding_size), jnp.float32)
    return lang, hour, day


def pack_params(p, emb_tables, raw_dim, embedding_size, padded_in=PADDED_IN):
    """One-time parameter prep: fuse l1+projection, fold embeddings & bias into the
    combined input weight, append l_output to the mid-weight stack, stack smalls."""
    hi = jax.lax.Precision.HIGHEST
    hidden = p["w2"].shape[0]
    # Column order [l1 | projection]: the half feeding the next matmul LHS (the BN /
    # residual path) lands in lanes 0..H-1 (zero-offset slice in the kernel).
    w_in = jnp.concatenate([p["w1"], p["wp"]], axis=1)        # [input_dim, 2H]
    b_in = jnp.concatenate([p["b1"], p["bp"]], axis=1)        # [1, 2H]
    pieces, off = [w_in[:raw_dim]], raw_dim
    for tbl in emb_tables:                                    # fold tables through rows
        pieces.append(jnp.dot(tbl, w_in[off:off + embedding_size], precision=hi))
        off += embedding_size
    pieces.append(b_in)                                       # always-selected bias row
    stacked = jnp.concatenate(pieces, axis=0)
    assert stacked.shape[0] <= padded_in, "fused input width exceeds 128 lanes"
    w_in_combined = jnp.pad(stacked, ((0, padded_in - stacked.shape[0]), (0, 0)))
    w_out_pad = jnp.pad(p["wo"], ((0, 0), (0, hidden - p["wo"].shape[1])))   # [H, H]
    b_out_pad = jnp.pad(p["bo"], ((0, 0), (0, hidden - p["bo"].shape[1])))   # [1, H]
    return {
        "w_in": w_in_combined.astype(jnp.bfloat16),                           # [128, 2H]
        "w_mid": jnp.stack([p["w2"], p["w3"], p["w4"], w_out_pad],
                           axis=0).astype(jnp.bfloat16),                      # [4, H, H]
        "vec": jnp.concatenate([p["b2"], p["b3"], p["b4"],
                                p["g1"], p["g2"], p["g3"], p["g4"],
                                p["be1"], p["be2"], p["be3"], p["be4"],
                                b_out_pad], axis=0),                          # [12, H] f32
    }


def reference_forward(x_raw, language, twitt_hour, twitt_day, p, emb_tables):
    """Plain-JAX reference that mirrors the PyTorch module literally (f32, HIGHEST)."""
    hi = jax.lax.Precision.HIGHEST
    emb_lang, emb_hour, emb_day = emb_tables
    x = jnp.concatenate([x_raw, emb_lang[language], emb_hour[twitt_hour],
                         emb_day[twitt_day]], axis=1)
    lin = lambda h, w, b: jnp.dot(h, w, precision=hi) + b
    lrelu = lambda h: jnp.where(h >= 0, h, LEAKY_SLOPE * h)

    def bn(h, g, be):
        mu = h.mean(0, keepdims=True)
        var = ((h - mu) ** 2).mean(0, keepdims=True)
        return g * (h - mu) / jnp.sqrt(var + BN_EPS) + be

    x_proj = lin(x, p["wp"], p["bp"])
    x_res = bn(lrelu(lin(x, p["w1"], p["b1"])), p["g1"], p["be1"])
    h = bn(lrelu(lin(x_res, p["w2"], p["b2"]) + x_proj), p["g2"], p["be2"])
    h = bn(lrelu(lin(h, p["w3"], p["b3"]) + x_proj), p["g3"], p["be3"])
    h = bn(lrelu(lin(h, p["w4"], p["b4"]) + x_res), p["g4"], p["be4"])
    return lin(h, p["wo"], p["bo"])


if __name__ == "__main__":
    # Small config consistent with the module's constructor
    hidden_size = 32
    num_languages = 10
    embedding_size = 8
    num_categorical_features = 4
    num_numerical_features = 2
    sketch_depth = 2
    sketch_width = 8
    batch = 8

    input_dim = (num_categorical_features + 16 * num_numerical_features
                 + embedding_size * 3 + sketch_depth * sketch_width)     # 76
    raw_dim = input_dim - 3 * embedding_size                             # 52

    root = jax.random.PRNGKey(0)
    k_par, k_emb, k_x, k_l, k_h, k_d = jax.random.split(root, 6)

    raw_params = init_raw_params(k_par, input_dim, hidden_size)
    emb_tables = init_embeddings(k_emb, num_languages, embedding_size)
    params = pack_params(raw_params, emb_tables, raw_dim, embedding_size)

    x_raw = jax.random.normal(k_x, (batch, raw_dim), jnp.float32)
    language = jax.random.randint(k_l, (batch,), 0, num_languages + 1)
    twitt_hour = jax.random.randint(k_h, (batch,), 0, 24)
    twitt_day = jax.random.randint(k_d, (batch,), 0, 31)

    out = model_forward(x_raw, language, twitt_hour, twitt_day, params,
                        n_lang_rows=num_languages + 1, n_hour_rows=24, n_day_rows=31)
    jax.block_until_ready(out)
    assert out.shape == (batch, 4) and out.dtype == jnp.float32

    ref = reference_forward(x_raw, language, twitt_hour, twitt_day, raw_params, emb_tables)
    # Tolerance sized for bf16 MXU operands (weights + activations) vs. the f32
    # HIGHEST-precision reference; all BN math stays f32 inside the kernel.
    max_err = float(jnp.max(jnp.abs(out - ref)))
    assert max_err < 5e-2, f"kernel deviates from reference: max_err={max_err}"

    print("KERNEL_OK")
</pallas_src>

<mosaic_0001>
module attributes {stable_mosaic.version = 11 : i64} {
  func.func @_model_kernel(%arg0: memref<8x128xf32, #tpu.memory_space<vmem>>, %arg1: memref<8x4xi32, #tpu.memory_space<vmem>>, %arg2: memref<128x64xbf16, #tpu.memory_space<vmem>>, %arg3: memref<4x32x32xbf16, #tpu.memory_space<vmem>>, %arg4: memref<12x32xf32, #tpu.memory_space<vmem>>, %arg5: memref<8x4xf32, #tpu.memory_space<vmem>>) attributes {dimension_semantics = [], scalar_prefetch = 0 : i64, scratch_operands = 0 : i64, tpu.core_type = #tpu.core_type<tc>} {
    %c0 = arith.constant 0 : index
    %c0_0 = arith.constant 0 : index
    %0 = vector.load %arg4[%c0, %c0_0] : memref<12x32xf32, #tpu.memory_space<vmem>>, vector<1x32xf32>
    %c1 = arith.constant 1 : index
    %c0_1 = arith.constant 0 : index
    %1 = vector.load %arg4[%c1, %c0_1] : memref<12x32xf32, #tpu.memory_space<vmem>>, vector<1x32xf32>
    %c2 = arith.constant 2 : index
    %c0_2 = arith.constant 0 : index
    %2 = vector.load %arg4[%c2, %c0_2] : memref<12x32xf32, #tpu.memory_space<vmem>>, vector<1x32xf32>
    %c3 = arith.constant 3 : index
    %c0_3 = arith.constant 0 : index
    %3 = vector.load %arg4[%c3, %c0_3] : memref<12x32xf32, #tpu.memory_space<vmem>>, vector<1x32xf32>
    %c4 = arith.constant 4 : index
    %c0_4 = arith.constant 0 : index
    %4 = vector.load %arg4[%c4, %c0_4] : memref<12x32xf32, #tpu.memory_space<vmem>>, vector<1x32xf32>
    %c5 = arith.constant 5 : index
    %c0_5 = arith.constant 0 : index
    %5 = vector.load %arg4[%c5, %c0_5] : memref<12x32xf32, #tpu.memory_space<vmem>>, vector<1x32xf32>
    %c6 = arith.constant 6 : index
    %c0_6 = arith.constant 0 : index
    %6 = vector.load %arg4[%c6, %c0_6] : memref<12x32xf32, #tpu.memory_space<vmem>>, vector<1x32xf32>
    %c7 = arith.constant 7 : index
    %c0_7 = arith.constant 0 : index
    %7 = vector.load %arg4[%c7, %c0_7] : memref<12x32xf32, #tpu.memory_space<vmem>>, vector<1x32xf32>
    %c8 = arith.constant 8 : index
    %c0_8 = arith.constant 0 : index
    %8 = vector.load %arg4[%c8, %c0_8] : memref<12x32xf32, #tpu.memory_space<vmem>>, vector<1x32xf32>
    %c9 = arith.constant 9 : index
    %c0_9 = arith.constant 0 : index
    %9 = vector.load %arg4[%c9, %c0_9] : memref<12x32xf32, #tpu.memory_space<vmem>>, vector<1x32xf32>
    %c10 = arith.constant 10 : index
    %c0_10 = arith.constant 0 : index
    %10 = vector.load %arg4[%c10, %c0_10] : memref<12x32xf32, #tpu.memory_space<vmem>>, vector<1x32xf32>
    %c11 = arith.constant 11 : index
    %c0_11 = arith.constant 0 : index
    %11 = vector.load %arg4[%c11, %c0_11] : memref<12x32xf32, #tpu.memory_space<vmem>>, vector<1x32xf32>
    %cst = arith.constant 1.250000e-01 : f32
    %12 = vector.broadcast %cst : f32 to vector<1x8xf32>
    %c0_12 = arith.constant 0 : index
    %c0_13 = arith.constant 0 : index
    %13 = vector.load %arg1[%c0_12, %c0_13] : memref<8x4xi32, #tpu.memory_space<vmem>>, vector<8x4xi32>
    %14 = tpu.iota {dimensions = array<i32: 1>} : vector<8x128xi32>
    %15 = vector.extract_strided_slice %13 {offsets = [0, 0], sizes = [8, 1], strides = [1, 1]} : vector<8x4xi32> to vector<8x1xi32>
    %c52_i32 = arith.constant 52 : i32
    %16 = vector.broadcast %c52_i32 : i32 to vector<8x1xi32>
    %17 = arith.addi %15, %16 : vector<8x1xi32>
    %18 = vector.broadcast %17 : vector<8x1xi32> to vector<8x128xi32>
    %19 = arith.cmpi eq, %14, %18 : vector<8x128xi32>
    %20 = vector.extract_strided_slice %13 {offsets = [0, 1], sizes = [8, 1], strides = [1, 1]} : vector<8x4xi32> to vector<8x1xi32>
    %c52_i32_14 = arith.constant 52 : i32
    %21 = vector.broadcast %c52_i32_14 : i32 to vector<8x1xi32>
    %22 = arith.addi %20, %21 : vector<8x1xi32>
    %c11_i32 = arith.constant 11 : i32
    %23 = vector.broadcast %c11_i32 : i32 to vector<8x1xi32>
    %24 = arith.addi %22, %23 : vector<8x1xi32>
    %25 = vector.broadcast %24 : vector<8x1xi32> to vector<8x128xi32>
    %26 = arith.cmpi eq, %14, %25 : vector<8x128xi32>
    %27 = arith.ori %19, %26 : vector<8x128xi1>
    %28 = vector.extract_strided_slice %13 {offsets = [0, 2], sizes = [8, 1], strides = [1, 1]} : vector<8x4xi32> to vector<8x1xi32>
    %c52_i32_15 = arith.constant 52 : i32
    %29 = vector.broadcast %c52_i32_15 : i32 to vector<8x1xi32>
    %30 = arith.addi %28, %29 : vector<8x1xi32>
    %c11_i32_16 = arith.constant 11 : i32
    %31 = vector.broadcast %c11_i32_16 : i32 to vector<8x1xi32>
    %32 = arith.addi %30, %31 : vector<8x1xi32>
    %c24_i32 = arith.constant 24 : i32
    %33 = vector.broadcast %c24_i32 : i32 to vector<8x1xi32>
    %34 = arith.addi %32, %33 : vector<8x1xi32>
    %35 = vector.broadcast %34 : vector<8x1xi32> to vector<8x128xi32>
    %36 = arith.cmpi eq, %14, %35 : vector<8x128xi32>
    %37 = arith.ori %27, %36 : vector<8x128xi1>
    %c118_i32 = arith.constant 118 : i32
    %38 = vector.broadcast %c118_i32 : i32 to vector<8x128xi32>
    %39 = arith.cmpi eq, %14, %38 : vector<8x128xi32>
    %40 = arith.ori %37, %39 : vector<8x128xi1>
    %41 = arith.extui %40 : vector<8x128xi1> to vector<8x128xi32>
    %42 = arith.sitofp %41 : vector<8x128xi32> to vector<8x128xf32>
    %c0_17 = arith.constant 0 : index
    %c0_18 = arith.constant 0 : index
    %43 = vector.load %arg0[%c0_17, %c0_18] : memref<8x128xf32, #tpu.memory_space<vmem>>, vector<8x128xf32>
    %44 = arith.addf %43, %42 : vector<8x128xf32>
    %45 = arith.truncf %44 : vector<8x128xf32> to vector<8x128xbf16>
    %c0_19 = arith.constant 0 : index
    %c0_20 = arith.constant 0 : index
    %46 = vector.load %arg2[%c0_19, %c0_20] : memref<128x64xbf16, #tpu.memory_space<vmem>>, vector<128x64xbf16>
    %cst_21 = arith.constant dense<0.000000e+00> : vector<8x64xf32>
    %47 = tpu.matmul %45, %46, %cst_21 {dimension_numbers = #tpu.dot_dimension_numbers<[1], [0], [0], [1], [0, 0, 1, 1], [], []>} : vector<8x128xbf16>, vector<128x64xbf16>, vector<8x64xf32> -> vector<8x64xf32>
    %48 = vector.extract_strided_slice %47 {offsets = [0, 0], sizes = [8, 32], strides = [1, 1]} : vector<8x64xf32> to vector<8x32xf32>
    %cst_22 = arith.constant 0.000000e+00 : f32
    %49 = vector.broadcast %cst_22 : f32 to vector<8x32xf32>
    %50 = arith.cmpf oge, %48, %49 : vector<8x32xf32>
    %cst_23 = arith.constant 0.00999999977 : f32
    %51 = vector.broadcast %cst_23 : f32 to vector<8x32xf32>
    %52 = arith.mulf %51, %48 : vector<8x32xf32>
    %53 = arith.select %50, %48, %52 : vector<8x32xi1>, vector<8x32xf32>
    %54 = arith.mulf %53, %53 : vector<8x32xf32>
    %55 = tpu.concatenate %53, %54 in 1 : vector<8x32xf32>, vector<8x32xf32> -> vector<8x64xf32>
    %cst_24 = arith.constant dense<0.000000e+00> : vector<1x64xf32>
    %56 = tpu.matmul %12, %55, %cst_24 {dimension_numbers = #tpu.dot_dimension_numbers<[1], [0], [0], [1], [0, 0, 1, 1], [], []>} : vector<1x8xf32>, vector<8x64xf32>, vector<1x64xf32> -> vector<1x64xf32>
    %57 = vector.extract_strided_slice %56 {offsets = [0, 0], sizes = [1, 32], strides = [1, 1]} : vector<1x64xf32> to vector<1x32xf32>
    %58 = vector.extract_strided_slice %56 {offsets = [0, 32], sizes = [1, 32], strides = [1, 1]} : vector<1x64xf32> to vector<1x32xf32>
    %59 = arith.mulf %57, %57 : vector<1x32xf32>
    %60 = arith.subf %58, %59 : vector<1x32xf32>
    %cst_25 = arith.constant 9.99999974E-6 : f32
    %61 = vector.broadcast %cst_25 : f32 to vector<1x32xf32>
    %62 = arith.addf %60, %61 : vector<1x32xf32>
    %63 = math.rsqrt %62 : vector<1x32xf32>
    %64 = arith.mulf %3, %63 : vector<1x32xf32>
    %65 = vector.broadcast %64 : vector<1x32xf32> to vector<8x32xf32>
    %66 = arith.mulf %53, %65 : vector<8x32xf32>
    %67 = arith.mulf %57, %64 : vector<1x32xf32>
    %68 = arith.subf %7, %67 : vector<1x32xf32>
    %69 = vector.broadcast %68 : vector<1x32xf32> to vector<8x32xf32>
    %70 = arith.addf %66, %69 : vector<8x32xf32>
    %71 = vector.extract_strided_slice %47 {offsets = [0, 32], sizes = [8, 32], strides = [1, 1]} : vector<8x64xf32> to vector<8x32xf32>
    %c0_26 = arith.constant 0 : index
    %c0_27 = arith.constant 0 : index
    %c0_28 = arith.constant 0 : index
    %72 = vector.load %arg3[%c0_26, %c0_27, %c0_28] : memref<4x32x32xbf16, #tpu.memory_space<vmem>>, vector<1x32x32xbf16>
    %73 = vector.shape_cast %72 : vector<1x32x32xbf16> to vector<32x32xbf16>
    %74 = arith.truncf %70 : vector<8x32xf32> to vector<8x32xbf16>
    %cst_29 = arith.constant dense<0.000000e+00> : vector<8x32xf32>
    %75 = tpu.matmul %74, %73, %cst_29 {dimension_numbers = #tpu.dot_dimension_numbers<[1], [0], [0], [1], [0, 0, 1, 1], [], []>} : vector<8x32xbf16>, vector<32x32xbf16>, vector<8x32xf32> -> vector<8x32xf32>
    %76 = vector.broadcast %0 : vector<1x32xf32> to vector<8x32xf32>
    %77 = arith.addf %75, %76 : vector<8x32xf32>
    %78 = arith.addf %77, %71 : vector<8x32xf32>
    %cst_30 = arith.constant 0.000000e+00 : f32
    %79 = vector.broadcast %cst_30 : f32 to vector<8x32xf32>
    %80 = arith.cmpf oge, %78, %79 : vector<8x32xf32>
    %cst_31 = arith.constant 0.00999999977 : f32
    %81 = vector.broadcast %cst_31 : f32 to vector<8x32xf32>
    %82 = arith.mulf %81, %78 : vector<8x32xf32>
    %83 = arith.select %80, %78, %82 : vector<8x32xi1>, vector<8x32xf32>
    %84 = arith.mulf %83, %83 : vector<8x32xf32>
    %85 = tpu.concatenate %83, %84 in 1 : vector<8x32xf32>, vector<8x32xf32> -> vector<8x64xf32>
    %cst_32 = arith.constant dense<0.000000e+00> : vector<1x64xf32>
    %86 = tpu.matmul %12, %85, %cst_32 {dimension_numbers = #tpu.dot_dimension_numbers<[1], [0], [0], [1], [0, 0, 1, 1], [], []>} : vector<1x8xf32>, vector<8x64xf32>, vector<1x64xf32> -> vector<1x64xf32>
    %87 = vector.extract_strided_slice %86 {offsets = [0, 0], sizes = [1, 32], strides = [1, 1]} : vector<1x64xf32> to vector<1x32xf32>
    %88 = vector.extract_strided_slice %86 {offsets = [0, 32], sizes = [1, 32], strides = [1, 1]} : vector<1x64xf32> to vector<1x32xf32>
    %89 = arith.mulf %87, %87 : vector<1x32xf32>
    %90 = arith.subf %88, %89 : vector<1x32xf32>
    %cst_33 = arith.constant 9.99999974E-6 : f32
    %91 = vector.broadcast %cst_33 : f32 to vector<1x32xf32>
    %92 = arith.addf %90, %91 : vector<1x32xf32>
    %93 = math.rsqrt %92 : vector<1x32xf32>
    %94 = arith.mulf %4, %93 : vector<1x32xf32>
    %95 = vector.broadcast %94 : vector<1x32xf32> to vector<8x32xf32>
    %96 = arith.mulf %83, %95 : vector<8x32xf32>
    %97 = arith.mulf %87, %94 : vector<1x32xf32>
    %98 = arith.subf %8, %97 : vector<1x32xf32>
    %99 = vector.broadcast %98 : vector<1x32xf32> to vector<8x32xf32>
    %100 = arith.addf %96, %99 : vector<8x32xf32>
    %c1_34 = arith.constant 1 : index
    %c0_35 = arith.constant 0 : index
    %c0_36 = arith.constant 0 : index
    %101 = vector.load %arg3[%c1_34, %c0_35, %c0_36] : memref<4x32x32xbf16, #tpu.memory_space<vmem>>, vector<1x32x32xbf16>
    %102 = vector.shape_cast %101 : vector<1x32x32xbf16> to vector<32x32xbf16>
    %103 = arith.truncf %100 : vector<8x32xf32> to vector<8x32xbf16>
    %cst_37 = arith.constant dense<0.000000e+00> : vector<8x32xf32>
    %104 = tpu.matmul %103, %102, %cst_37 {dimension_numbers = #tpu.dot_dimension_numbers<[1], [0], [0], [1], [0, 0, 1, 1], [], []>} : vector<8x32xbf16>, vector<32x32xbf16>, vector<8x32xf32> -> vector<8x32xf32>
    %105 = vector.broadcast %1 : vector<1x32xf32> to vector<8x32xf32>
    %106 = arith.addf %104, %105 : vector<8x32xf32>
    %107 = arith.addf %106, %71 : vector<8x32xf32>
    %cst_38 = arith.constant 0.000000e+00 : f32
    %108 = vector.broadcast %cst_38 : f32 to vector<8x32xf32>
    %109 = arith.cmpf oge, %107, %108 : vector<8x32xf32>
    %cst_39 = arith.constant 0.00999999977 : f32
    %110 = vector.broadcast %cst_39 : f32 to vector<8x32xf32>
    %111 = arith.mulf %110, %107 : vector<8x32xf32>
    %112 = arith.select %109, %107, %111 : vector<8x32xi1>, vector<8x32xf32>
    %113 = arith.mulf %112, %112 : vector<8x32xf32>
    %114 = tpu.concatenate %112, %113 in 1 : vector<8x32xf32>, vector<8x32xf32> -> vector<8x64xf32>
    %cst_40 = arith.constant dense<0.000000e+00> : vector<1x64xf32>
    %115 = tpu.matmul %12, %114, %cst_40 {dimension_numbers = #tpu.dot_dimension_numbers<[1], [0], [0], [1], [0, 0, 1, 1], [], []>} : vector<1x8xf32>, vector<8x64xf32>, vector<1x64xf32> -> vector<1x64xf32>
    %116 = vector.extract_strided_slice %115 {offsets = [0, 0], sizes = [1, 32], strides = [1, 1]} : vector<1x64xf32> to vector<1x32xf32>
    %117 = vector.extract_strided_slice %115 {offsets = [0, 32], sizes = [1, 32], strides = [1, 1]} : vector<1x64xf32> to vector<1x32xf32>
    %118 = arith.mulf %116, %116 : vector<1x32xf32>
    %119 = arith.subf %117, %118 : vector<1x32xf32>
    %cst_41 = arith.constant 9.99999974E-6 : f32
    %120 = vector.broadcast %cst_41 : f32 to vector<1x32xf32>
    %121 = arith.addf %119, %120 : vector<1x32xf32>
    %122 = math.rsqrt %121 : vector<1x32xf32>
    %123 = arith.mulf %5, %122 : vector<1x32xf32>
    %124 = vector.broadcast %123 : vector<1x32xf32> to vector<8x32xf32>
    %125 = arith.mulf %112, %124 : vector<8x32xf32>
    %126 = arith.mulf %116, %123 : vector<1x32xf32>
    %127 = arith.subf %9, %126 : vector<1x32xf32>
    %128 = vector.broadcast %127 : vector<1x32xf32> to vector<8x32xf32>
    %129 = arith.addf %125, %128 : vector<8x32xf32>
    %c2_42 = arith.constant 2 : index
    %c0_43 = arith.constant 0 : index
    %c0_44 = arith.constant 0 : index
    %130 = vector.load %arg3[%c2_42, %c0_43, %c0_44] : memref<4x32x32xbf16, #tpu.memory_space<vmem>>, vector<1x32x32xbf16>
    %131 = vector.shape_cast %130 : vector<1x32x32xbf16> to vector<32x32xbf16>
    %132 = arith.truncf %129 : vector<8x32xf32> to vector<8x32xbf16>
    %cst_45 = arith.constant dense<0.000000e+00> : vector<8x32xf32>
    %133 = tpu.matmul %132, %131, %cst_45 {dimension_numbers = #tpu.dot_dimension_numbers<[1], [0], [0], [1], [0, 0, 1, 1], [], []>} : vector<8x32xbf16>, vector<32x32xbf16>, vector<8x32xf32> -> vector<8x32xf32>
    %134 = vector.broadcast %2 : vector<1x32xf32> to vector<8x32xf32>
    %135 = arith.addf %133, %134 : vector<8x32xf32>
    %136 = arith.addf %135, %70 : vector<8x32xf32>
    %cst_46 = arith.constant 0.000000e+00 : f32
    %137 = vector.broadcast %cst_46 : f32 to vector<8x32xf32>
    %138 = arith.cmpf oge, %136, %137 : vector<8x32xf32>
    %cst_47 = arith.constant 0.00999999977 : f32
    %139 = vector.broadcast %cst_47 : f32 to vector<8x32xf32>
    %140 = arith.mulf %139, %136 : vector<8x32xf32>
    %141 = arith.select %138, %136, %140 : vector<8x32xi1>, vector<8x32xf32>
    %142 = arith.mulf %141, %141 : vector<8x32xf32>
    %143 = tpu.concatenate %141, %142 in 1 : vector<8x32xf32>, vector<8x32xf32> -> vector<8x64xf32>
    %cst_48 = arith.constant dense<0.000000e+00> : vector<1x64xf32>
    %144 = tpu.matmul %12, %143, %cst_48 {dimension_numbers = #tpu.dot_dimension_numbers<[1], [0], [0], [1], [0, 0, 1, 1], [], []>} : vector<1x8xf32>, vector<8x64xf32>, vector<1x64xf32> -> vector<1x64xf32>
    %145 = vector.extract_strided_slice %144 {offsets = [0, 0], sizes = [1, 32], strides = [1, 1]} : vector<1x64xf32> to vector<1x32xf32>
    %146 = vector.extract_strided_slice %144 {offsets = [0, 32], sizes = [1, 32], strides = [1, 1]} : vector<1x64xf32> to vector<1x32xf32>
    %147 = arith.mulf %145, %145 : vector<1x32xf32>
    %148 = arith.subf %146, %147 : vector<1x32xf32>
    %cst_49 = arith.constant 9.99999974E-6 : f32
    %149 = vector.broadcast %cst_49 : f32 to vector<1x32xf32>
    %150 = arith.addf %148, %149 : vector<1x32xf32>
    %151 = math.rsqrt %150 : vector<1x32xf32>
    %152 = arith.mulf %6, %151 : vector<1x32xf32>
    %153 = vector.broadcast %152 : vector<1x32xf32> to vector<8x32xf32>
    %154 = arith.mulf %141, %153 : vector<8x32xf32>
    %155 = arith.mulf %145, %152 : vector<1x32xf32>
    %156 = arith.subf %10, %155 : vector<1x32xf32>
    %157 = vector.broadcast %156 : vector<1x32xf32> to vector<8x32xf32>
    %158 = arith.addf %154, %157 : vector<8x32xf32>
    %c3_50 = arith.constant 3 : index
    %c0_51 = arith.constant 0 : index
    %c0_52 = arith.constant 0 : index
    %159 = vector.load %arg3[%c3_50, %c0_51, %c0_52] : memref<4x32x32xbf16, #tpu.memory_space<vmem>>, vector<1x32x32xbf16>
    %160 = vector.shape_cast %159 : vector<1x32x32xbf16> to vector<32x32xbf16>
    %161 = arith.truncf %158 : vector<8x32xf32> to vector<8x32xbf16>
    %cst_53 = arith.constant dense<0.000000e+00> : vector<8x32xf32>
    %162 = tpu.matmul %161, %160, %cst_53 {dimension_numbers = #tpu.dot_dimension_numbers<[1], [0], [0], [1], [0, 0, 1, 1], [], []>} : vector<8x32xbf16>, vector<32x32xbf16>, vector<8x32xf32> -> vector<8x32xf32>
    %163 = vector.broadcast %11 : vector<1x32xf32> to vector<8x32xf32>
    %164 = arith.addf %162, %163 : vector<8x32xf32>
    %165 = vector.extract_strided_slice %164 {offsets = [0, 0], sizes = [8, 4], strides = [1, 1]} : vector<8x32xf32> to vector<8x4xf32>
    %c0_54 = arith.constant 0 : index
    %c0_55 = arith.constant 0 : index
    %166 = vector.load %arg5[%c0_54, %c0_55] : memref<8x4xf32, #tpu.memory_space<vmem>>, vector<8x4xf32>
    tpu.vector_store %arg5[%c0_54, %c0_55], %165 {strides = array<i32>} : memref<8x4xf32, #tpu.memory_space<vmem>>, vector<8x4xf32>,
    return
  }
}

</mosaic_0001>

<llo_original>
// kernel: tpu_custom_call.1
$region0: #{tpu_custom_call.1}
  #allocation0 [shape = 'u32[]', space=smem, size = 0x4, offset = 0x4, fixed_abs, tag = 'smem constant byte address 0x4 - core index']
  #allocation1 [shape = 'u32[144,128]{1,0:T(1,128)}', space=vmem, size = 0x12000, scoped, tag = 'internal scratch']
  %s0 = inlined_call_operand.vmem [shape: f32[8,128], index: 0, kind: input, shape index: {}]
  %s1 = inlined_call_operand.vmem [shape: s32[8,4], index: 1, kind: input, shape index: {}]
  %s2 = inlined_call_operand.vmem [shape: bf16[128,64], index: 2, kind: input, shape index: {}]
  %s3 = inlined_call_operand.vmem [shape: bf16[4,32,32], index: 3, kind: input, shape index: {}]
  %s4 = inlined_call_operand.vmem [shape: f32[12,32], index: 4, kind: input, shape index: {}]
  %s5 = inlined_call_operand.vmem [shape: f32[8,4], index: 5, kind: output, shape index: {}]
  %s6 = sld [smem:[#allocation0]]
  $region30: #{tpu_custom_call.1} parent=0
    _
  %s8 = ssub.s32 1, %s6
  %s9 = scalar_select 0, %s8, %s6
  // Predicated region
  $region2: #{tpu_custom_call.1} parent=0 // pred_check
    _
  $region3: #{tpu_custom_call.1} parent=0 // pred_check_branch
    %11 = sbr.rel (0) target = $region5
  $region4: #{tpu_custom_call.1} parent=0 // pred_region
    _
  $region5: #{tpu_custom_call.1} parent=0 // pred_fallthru
    _
  // Predicated region
  $region6: #{tpu_custom_call.1} parent=0 // pred_check
    _
  $region7: #{tpu_custom_call.1} parent=0 // pred_check_branch
    %13 = sbr.rel (0) target = $region9
  $region8: #{tpu_custom_call.1} parent=0 // pred_region
    _
  $region9: #{tpu_custom_call.1} parent=0 // pred_fallthru
    _
  // Predicated region
  $region10: #{tpu_custom_call.1} parent=0 // pred_check
    _
  $region11: #{tpu_custom_call.1} parent=0 // pred_check_branch
    %15 = sbr.rel (0) target = $region13
  $region12: #{tpu_custom_call.1} parent=0 // pred_region
    _
  $region13: #{tpu_custom_call.1} parent=0 // pred_fallthru
    _
  // Predicated region
  $region14: #{tpu_custom_call.1} parent=0 // pred_check
    _
  $region15: #{tpu_custom_call.1} parent=0 // pred_check_branch
    %17 = sbr.rel (0) target = $region17
  $region16: #{tpu_custom_call.1} parent=0 // pred_region
    _
  $region17: #{tpu_custom_call.1} parent=0 // pred_fallthru
    _
  // Predicated region
  $region18: #{tpu_custom_call.1} parent=0 // pred_check
    _
  $region19: #{tpu_custom_call.1} parent=0 // pred_check_branch
    %19 = sbr.rel (0) target = $region21
  $region20: #{tpu_custom_call.1} parent=0 // pred_region
    _
  $region21: #{tpu_custom_call.1} parent=0 // pred_fallthru
    _
  %v21 = vld [vmem:[%s4] sm:$0x1]
  %v22 = vld [vmem:[%s4 + $0x1] sm:$0x1]
  %v23 = vld [vmem:[%s4 + $0x2] sm:$0x1]
  %v24 = vld [vmem:[%s4 + $0x3] sm:$0x1]
  %v25 = vld [vmem:[%s4 + $0x4] sm:$0x1]
  %v26 = vld [vmem:[%s4 + $0x5] sm:$0x1]
  %v27 = vld [vmem:[%s4 + $0x6] sm:$0x1]
  %v28 = vld [vmem:[%s4 + $0x7] sm:$0x1]
  %v29 = vld [vmem:[%s4 + $0x8] sm:$0x1]
  %v30 = vld [vmem:[%s4 + $0x9] sm:$0x1]
  %v31 = vld [vmem:[%s4 + $0xa] sm:$0x1]
  %v32 = vld [vmem:[%s4 + $0xb] sm:$0x1]
  %v33 = vld [vmem:[%s1] sm:$0xff]
  %v34 = vlaneseq
  %v35 = vand.u32 %v34, 127
  %v36 = vadd.s32 %v33, 52
  %37 = vset.pattern.permute.xlu0 0
  %38 = vperm.xlu0 %37, %v36
  %v39 = vpop.permute.xlu0 %38
  %vm40 = vcmp.eq.s32.totalorder %v35, %v39
  %v41 = vadd.s32 %v36, 11
  %42 = vset.pattern.permute.xlu0 1
  %43 = vperm.xlu0 %42, %v41
  %v44 = vpop.permute.xlu0 %43
  %vm45 = vcmp.eq.s32.totalorder %v35, %v44
  %vm46 = vmor %vm40, %vm45
  %v47 = vadd.s32 %v41, 24
  %48 = vset.pattern.permute.xlu0 2
  %49 = vperm.xlu0 %48, %v47
  %v50 = vpop.permute.xlu0 %49
  %vm51 = vcmp.eq.s32.totalorder %v35, %v50
  %vm52 = vmor %vm46, %vm51
  %vm53 = vcmp.eq.s32.totalorder %v35, 118
  %vm54 = vmor %vm52, %vm53
  %v55 = vsel %vm54, 1, 0
  %v56 = vcvt.s32.f32 %v55
  %v57 = vld [vmem:[%s0] sm:$0xff]
  %v58 = vadd.f32 %v57, %v56
  %v59 = vpack.c.bf16 %v58, %v58
  %v60 = vld [vmem:[%s2] sm:$0xf]
  %v61 = vld [vmem:[%s2 + $0x4] sm:$0xf]
  %v62 = vld [vmem:[%s2 + $0x8] sm:$0xf]
  %v63 = vld [vmem:[%s2 + $0xc] sm:$0xf]
  %v64 = vld [vmem:[%s2 + $0x10] sm:$0xf]
  %v65 = vld [vmem:[%s2 + $0x14] sm:$0xf]
  %v66 = vld [vmem:[%s2 + $0x18] sm:$0xf]
  %v67 = vld [vmem:[%s2 + $0x1c] sm:$0xf]
  %v68 = vld [vmem:[%s2 + $0x20] sm:$0xf]
  %v69 = vld [vmem:[%s2 + $0x24] sm:$0xf]
  %v70 = vld [vmem:[%s2 + $0x28] sm:$0xf]
  %v71 = vld [vmem:[%s2 + $0x2c] sm:$0xf]
  %v72 = vld [vmem:[%s2 + $0x30] sm:$0xf]
  %v73 = vld [vmem:[%s2 + $0x34] sm:$0xf]
  %v74 = vld [vmem:[%s2 + $0x38] sm:$0xf]
  %v75 = vld [vmem:[%s2 + $0x3c] sm:$0xf]
  %v92 = vunpack.c.l.b16 %v60
  %v93 = vunpack.c.l.b16 %v61
  %v94 = vunpack.c.l.b16 %v62
  %v95 = vunpack.c.l.b16 %v63
  %v96 = vunpack.c.l.b16 %v64
  %v97 = vunpack.c.l.b16 %v65
  %v98 = vunpack.c.l.b16 %v66
  %v99 = vunpack.c.l.b16 %v67
  %v100 = vunpack.c.l.b16 %v68
  %v101 = vunpack.c.l.b16 %v69
  %v102 = vunpack.c.l.b16 %v70
  %v103 = vunpack.c.l.b16 %v71
  %v104 = vunpack.c.l.b16 %v72
  %v105 = vunpack.c.l.b16 %v73
  %v106 = vunpack.c.l.b16 %v74
  %v107 = vunpack.c.l.b16 %v75
  %v108 = vpack.c.b16 %v93, %v92
  %v109 = vpack.c.b16 %v95, %v94
  %v110 = vpack.c.b16 %v97, %v96
  %v111 = vpack.c.b16 %v99, %v98
  %v112 = vpack.c.b16 %v101, %v100
  %v113 = vpack.c.b16 %v103, %v102
  %v114 = vpack.c.b16 %v105, %v104
  %v115 = vpack.c.b16 %v107, %v106
  %124 = vmatprep.subr.bf16.mxu0 0
  %125 = vmatpush1.bf16.msra.mxu0 %v115
  %126 = vmatprep.subr.bf16.mxu0 0
  %127 = vmatpush1.bf16.msra.mxu0 %v114
  %128 = vmatprep.subr.bf16.mxu0 0
  %129 = vmatpush1.bf16.msra.mxu0 %v113
  %130 = vmatprep.subr.bf16.mxu0 0
  %131 = vmatpush1.bf16.msra.mxu0 %v112
  %132 = vmatprep.subr.bf16.mxu0 0
  %133 = vmatpush1.bf16.msra.mxu0 %v111
  %134 = vmatprep.subr.bf16.mxu0 0
  %135 = vmatpush1.bf16.msra.mxu0 %v110
  %136 = vmatprep.subr.bf16.mxu0 0
  %137 = vmatpush1.bf16.msra.mxu0 %v109
  %138 = vmatprep.subr.bf16.mxu0 0
  %139 = vmatpush1.bf16.msra.mxu0 %v108
  %140 = vmatprep.subr.bf16.mxu0 0
  %141 = vmatpush2.bf16.msra.mxu0 0
  %142 = vmatprep.subr.bf16.mxu0 0
  %143 = vmatpush2.bf16.msra.mxu0 0
  %144 = vmatprep.subr.bf16.mxu0 0
  %145 = vmatpush2.bf16.msra.mxu0 0
  %146 = vmatprep.subr.bf16.mxu0 0
  %147 = vmatpush2.bf16.msra.mxu0 0
  %148 = vmatprep.subr.bf16.mxu0 0
  %149 = vmatpush2.bf16.msra.mxu0 0
  %150 = vmatprep.subr.bf16.mxu0 0
  %151 = vmatpush2.bf16.msra.mxu0 0
  %152 = vmatprep.subr.bf16.mxu0 0
  %153 = vmatpush2.bf16.msra.mxu0 0
  %154 = vmatprep.subr.bf16.mxu0 0
  %155 = vmatpush2.bf16.msra.mxu0 0
  %156 = vmatprep.mubr.bf16.mxu0 0
  %157 = vmatmul.mubr.bf16.gmra.mxu0 %v59
  %v158 = vpop.f32.mrf.mxu0
  %v159 = vadd.f32 0.0, %v158
  %v160 = vpop.f32.mrf.mxu0
  %v161 = vpop.f32.mrf.mxu0
  %v162 = vpop.f32.mrf.mxu0
  %163 = vdwg.mxu0
  %vm164 = vcmp.ge.f32.partialorder %v159, 0.0
  %v165 = vmul.f32 %v159, 0.01
  %v166 = vsel %vm164, %v159, %v165
  %v167 = vmul.f32 %v166, %v166
  %169 = vrot.lane.b32.xlu0 %v167, 32
  %v170 = vpop.permute.xlu0 %169
  %vm172 = vcmask 261120
  %v173 = vsel %vm172, %v166, %v170
  %vm174 = vcmask 64512
  %v176 = vsel %vm174, 0.125, 0
  %178 = vmatprep.subr.mxu0 0.0
  %179 = vmatpush1.msra.mxu0 0.0
  %180 = vmatprep.subr.mxu0 0.0
  %181 = vmatpush1.msra.mxu0 0.0
  %182 = vmatprep.subr.mxu0 0.0
  %183 = vmatpush1.msra.mxu0 0.0
  %184 = vmatprep.subr.mxu0 0.0
  %185 = vmatpush1.msra.mxu0 0.0
  %186 = vmatprep.subr.mxu0 0.0
  %187 = vmatpush1.msra.mxu0 0.0
  %188 = vmatprep.subr.mxu0 0.0
  %189 = vmatpush1.msra.mxu0 0.0
  %190 = vmatprep.subr.mxu0 0.0
  %191 = vmatpush1.msra.mxu0 0.0
  %192 = vmatprep.subr.mxu0 0.0
  %193 = vmatpush1.msra.mxu0 0.0
  %194 = vmatprep.subr.mxu0 0.0
  %195 = vmatpush1.msra.mxu0 0.0
  %196 = vmatprep.subr.mxu0 0.0
  %197 = vmatpush1.msra.mxu0 0.0
  %198 = vmatprep.subr.mxu0 0.0
  %199 = vmatpush1.msra.mxu0 0.0
  %200 = vmatprep.subr.mxu0 0.0
  %201 = vmatpush1.msra.mxu0 0.0
  %202 = vmatprep.subr.mxu0 0.0
  %203 = vmatpush1.msra.mxu0 0.0
  %204 = vmatprep.subr.mxu0 0.0
  %205 = vmatpush1.msra.mxu0 0.0
  %206 = vmatprep.subr.mxu0 0.0
  %207 = vmatpush1.msra.mxu0 0.0
  %208 = vmatprep.subr.mxu0 0.0
  %209 = vmatpush1.msra.mxu0 %v173
  %210 = vmatprep.subr.mxu0 0.0
  %211 = vmatpush2.msra.mxu0 0.0
  %212 = vmatprep.subr.mxu0 0.0
  %213 = vmatpush2.msra.mxu0 0.0
  %214 = vmatprep.subr.mxu0 0.0
  %215 = vmatpush2.msra.mxu0 0.0
  %216 = vmatprep.subr.mxu0 0.0
  %217 = vmatpush2.msra.mxu0 0.0
  %218 = vmatprep.subr.mxu0 0.0
  %219 = vmatpush2.msra.mxu0 0.0
  %220 = vmatprep.subr.mxu0 0.0
  %221 = vmatpush2.msra.mxu0 0.0
  %222 = vmatprep.subr.mxu0 0.0
  %223 = vmatpush2.msra.mxu0 0.0
  %224 = vmatprep.subr.mxu0 0.0
  %225 = vmatpush2.msra.mxu0 0.0
  %226 = vmatprep.subr.mxu0 0.0
  %227 = vmatpush2.msra.mxu0 0.0
  %228 = vmatprep.subr.mxu0 0.0
  %229 = vmatpush2.msra.mxu0 0.0
  %230 = vmatprep.subr.mxu0 0.0
  %231 = vmatpush2.msra.mxu0 0.0
  %232 = vmatprep.subr.mxu0 0.0
  %233 = vmatpush2.msra.mxu0 0.0
  %234 = vmatprep.subr.mxu0 0.0
  %235 = vmatpush2.msra.mxu0 0.0
  %236 = vmatprep.subr.mxu0 0.0
  %237 = vmatpush2.msra.mxu0 0.0
  %238 = vmatprep.subr.mxu0 0.0
  %239 = vmatpush2.msra.mxu0 0.0
  %240 = vmatprep.subr.mxu0 0.0
  %241 = vmatpush2.msra.mxu0 0.0
  %242 = vmatprep.mubr.f32.mxu0 0.0
  %243 = vmatmul.mubr.f32.gmra.mxu0 %v176
  %v244 = vpop.f32.mrf.mxu0
  %v245 = vadd.f32 0.0, %v244
  %v246 = vpop.f32.mrf.mxu0
  %247 = vdwg.mxu0
  %v248 = vmul.f32 %v245, %v245
  %250 = vrot.lane.b32.xlu0 %v248, 32
  %v251 = vpop.permute.xlu0 %250
  %v253 = vsub.f32 %v245, %v251
  %v254 = vadd.f32 %v253, 1e-05
  %v255 = vrsqrt.pop %v254
  %257 = vrot.lane.b32.xlu0 %v255, 96
  %v258 = vpop.permute.xlu0 %257
  %v260 = vmul.f32 %v24, %v258
  %v261 = vlaneseq
  %v262 = vshrl.u32 %v261, 7
  %v263 = vsub.s32 0, %v262
  %v264 = vrot.slane %v260, %v263
  %v265 = vmul.f32 %v166, %v264
  %v266 = vmul.f32 %v245, %v260
  %v267 = vsub.f32 %v28, %v266
  %v268 = vlaneseq
  %v269 = vshrl.u32 %v268, 7
  %v270 = vsub.s32 0, %v269
  %v271 = vrot.slane %v267, %v270
  %v272 = vadd.f32 %v265, %v271
  %v273 = vld [vmem:[%s3] sm:$0xf]
  %v274 = vld [vmem:[%s3 + $0x4] sm:$0xf]
  %v275 = vld [vmem:[%s3 + $0x8] sm:$0xf]
  %v276 = vld [vmem:[%s3 + $0xc] sm:$0xf]
  %v277 = vpack.c.bf16 %v272, %v272
  %v278 = vlaneseq
  %v279 = vshrl.u32 %v278, 7
  %v280 = vsub.s32 0, %v279
  %v281 = vrot.slane %v21, %v280
  %v286 = vunpack.c.l.b16 %v273
  %v287 = vunpack.c.l.b16 %v274
  %v288 = vunpack.c.l.b16 %v275
  %v289 = vunpack.c.l.b16 %v276
  %v290 = vpack.c.b16 %v287, %v286
  %v291 = vpack.c.b16 %v289, %v288
  %v295 = vsel %vm172, %v277, 0
  %297 = vmatprep.subr.bf16.mxu0 0
  %298 = vmatpush1.bf16.msra.mxu0 0
  %299 = vmatprep.subr.bf16.mxu0 0
  %300 = vmatpush1.bf16.msra.mxu0 0
  %301 = vmatprep.subr.bf16.mxu0 0
  %302 = vmatpush1.bf16.msra.mxu0 0
  %303 = vmatprep.subr.bf16.mxu0 0
  %304 = vmatpush1.bf16.msra.mxu0 0
  %305 = vmatprep.subr.bf16.mxu0 0
  %306 = vmatpush1.bf16.msra.mxu0 0
  %307 = vmatprep.subr.bf16.mxu0 0
  %308 = vmatpush1.bf16.msra.mxu0 0
  %309 = vmatprep.subr.bf16.mxu0 0
  %310 = vmatpush1.bf16.msra.mxu0 %v291
  %311 = vmatprep.subr.bf16.mxu0 0
  %312 = vmatpush1.bf16.msra.mxu0 %v290
  %313 = vmatprep.subr.bf16.mxu0 0
  %314 = vmatpush2.bf16.msra.mxu0 0
  %315 = vmatprep.subr.bf16.mxu0 0
  %316 = vmatpush2.bf16.msra.mxu0 0
  %317 = vmatprep.subr.bf16.mxu0 0
  %318 = vmatpush2.bf16.msra.mxu0 0
  %319 = vmatprep.subr.bf16.mxu0 0
  %320 = vmatpush2.bf16.msra.mxu0 0
  %321 = vmatprep.subr.bf16.mxu0 0
  %322 = vmatpush2.bf16.msra.mxu0 0
  %323 = vmatprep.subr.bf16.mxu0 0
  %324 = vmatpush2.bf16.msra.mxu0 0
  %325 = vmatprep.subr.bf16.mxu0 0
  %326 = vmatpush2.bf16.msra.mxu0 0
  %327 = vmatprep.subr.bf16.mxu0 0
  %328 = vmatpush2.bf16.msra.mxu0 0
  %329 = vmatprep.mubr.bf16.mxu0 0
  %330 = vmatmul.mubr.bf16.gmra.mxu0 %v295
  %v331 = vpop.f32.mrf.mxu0
  %v332 = vadd.f32 %v281, %v331
  %v333 = vpop.f32.mrf.mxu0
  %v334 = vpop.f32.mrf.mxu0
  %v335 = vpop.f32.mrf.mxu0
  %336 = vdwg.mxu0
  %338 = vrot.lane.b32.xlu0 %v159, 96
  %v339 = vpop.permute.xlu0 %338
  %v341 = vadd.f32 %v332, %v339
  %vm342 = vcmp.ge.f32.partialorder %v341, 0.0
  %v343 = vmul.f32 %v341, 0.01
  %v344 = vsel %vm342, %v341, %v343
  %v345 = vmul.f32 %v344, %v344
  %347 = vrot.lane.b32.xlu0 %v345, 32
  %v348 = vpop.permute.xlu0 %347
  %v350 = vsel %vm172, %v344, %v348
  %351 = vmatprep.subr.mxu0 0.0
  %352 = vmatpush1.msra.mxu0 0.0
  %353 = vmatprep.subr.mxu0 0.0
  %354 = vmatpush1.msra.mxu0 0.0
  %355 = vmatprep.subr.mxu0 0.0
  %356 = vmatpush1.msra.mxu0 0.0
  %357 = vmatprep.subr.mxu0 0.0
  %358 = vmatpush1.msra.mxu0 0.0
  %359 = vmatprep.subr.mxu0 0.0
  %360 = vmatpush1.msra.mxu0 0.0
  %361 = vmatprep.subr.mxu0 0.0
  %362 = vmatpush1.msra.mxu0 0.0
  %363 = vmatprep.subr.mxu0 0.0
  %364 = vmatpush1.msra.mxu0 0.0
  %365 = vmatprep.subr.mxu0 0.0
  %366 = vmatpush1.msra.mxu0 0.0
  %367 = vmatprep.subr.mxu0 0.0
  %368 = vmatpush1.msra.mxu0 0.0
  %369 = vmatprep.subr.mxu0 0.0
  %370 = vmatpush1.msra.mxu0 0.0
  %371 = vmatprep.subr.mxu0 0.0
  %372 = vmatpush1.msra.mxu0 0.0
  %373 = vmatprep.subr.mxu0 0.0
  %374 = vmatpush1.msra.mxu0 0.0
  %375 = vmatprep.subr.mxu0 0.0
  %376 = vmatpush1.msra.mxu0 0.0
  %377 = vmatprep.subr.mxu0 0.0
  %378 = vmatpush1.msra.mxu0 0.0
  %379 = vmatprep.subr.mxu0 0.0
  %380 = vmatpush1.msra.mxu0 0.0
  %381 = vmatprep.subr.mxu0 0.0
  %382 = vmatpush1.msra.mxu0 %v350
  %383 = vmatprep.subr.mxu0 0.0
  %384 = vmatpush2.msra.mxu0 0.0
  %385 = vmatprep.subr.mxu0 0.0
  %386 = vmatpush2.msra.mxu0 0.0
  %387 = vmatprep.subr.mxu0 0.0
  %388 = vmatpush2.msra.mxu0 0.0
  %389 = vmatprep.subr.mxu0 0.0
  %390 = vmatpush2.msra.mxu0 0.0
  %391 = vmatprep.subr.mxu0 0.0
  %392 = vmatpush2.msra.mxu0 0.0
  %393 = vmatprep.subr.mxu0 0.0
  %394 = vmatpush2.msra.mxu0 0.0
  %395 = vmatprep.subr.mxu0 0.0
  %396 = vmatpush2.msra.mxu0 0.0
  %397 = vmatprep.subr.mxu0 0.0
  %398 = vmatpush2.msra.mxu0 0.0
  %399 = vmatprep.subr.mxu0 0.0
  %400 = vmatpush2.msra.mxu0 0.0
  %401 = vmatprep.subr.mxu0 0.0
  %402 = vmatpush2.msra.mxu0 0.0
  %403 = vmatprep.subr.mxu0 0.0
  %404 = vmatpush2.msra.mxu0 0.0
  %405 = vmatprep.subr.mxu0 0.0
  %406 = vmatpush2.msra.mxu0 0.0
  %407 = vmatprep.subr.mxu0 0.0
  %408 = vmatpush2.msra.mxu0 0.0
  %409 = vmatprep.subr.mxu0 0.0
  %410 = vmatpush2.msra.mxu0 0.0
  %411 = vmatprep.subr.mxu0 0.0
  %412 = vmatpush2.msra.mxu0 0.0
  %413 = vmatprep.subr.mxu0 0.0
  %414 = vmatpush2.msra.mxu0 0.0
  %415 = vmatprep.mubr.f32.mxu0 0.0
  %416 = vmatmul.mubr.f32.gmra.mxu0 %v176
  %v417 = vpop.f32.mrf.mxu0
  %v418 = vadd.f32 0.0, %v417
  %v419 = vpop.f32.mrf.mxu0
  %420 = vdwg.mxu0
  %v421 = vmul.f32 %v418, %v418
  %423 = vrot.lane.b32.xlu0 %v421, 32
  %v424 = vpop.permute.xlu0 %423
  %v426 = vsub.f32 %v418, %v424
  %v427 = vadd.f32 %v426, 1e-05
  %v428 = vrsqrt.pop %v427
  %430 = vrot.lane.b32.xlu0 %v428, 96
  %v431 = vpop.permute.xlu0 %430
  %v433 = vmul.f32 %v25, %v431
  %v434 = vlaneseq
  %v435 = vshrl.u32 %v434, 7
  %v436 = vsub.s32 0, %v435
  %v437 = vrot.slane %v433, %v436
  %v438 = vmul.f32 %v344, %v437
  %v439 = vmul.f32 %v418, %v433
  %v440 = vsub.f32 %v29, %v439
  %v441 = vlaneseq
  %v442 = vshrl.u32 %v441, 7
  %v443 = vsub.s32 0, %v442
  %v444 = vrot.slane %v440, %v443
  %v445 = vadd.f32 %v438, %v444
  %s446 = scalar_lea.vmem %s3, 16
  %v447 = vld [vmem:[%s446] sm:$0xf]
  %v448 = vld [vmem:[%s446 + $0x4] sm:$0xf]
  %v449 = vld [vmem:[%s446 + $0x8] sm:$0xf]
  %v450 = vld [vmem:[%s446 + $0xc] sm:$0xf]
  %v451 = vpack.c.bf16 %v445, %v445
  %v452 = vlaneseq
  %v453 = vshrl.u32 %v452, 7
  %v454 = vsub.s32 0, %v453
  %v455 = vrot.slane %v22, %v454
  %v460 = vunpack.c.l.b16 %v447
  %v461 = vunpack.c.l.b16 %v448
  %v462 = vunpack.c.l.b16 %v449
  %v463 = vunpack.c.l.b16 %v450
  %v464 = vpack.c.b16 %v461, %v460
  %v465 = vpack.c.b16 %v463, %v462
  %v469 = vsel %vm172, %v451, 0
  %471 = vmatprep.subr.bf16.mxu0 0
  %472 = vmatpush1.bf16.msra.mxu0 0
  %473 = vmatprep.subr.bf16.mxu0 0
  %474 = vmatpush1.bf16.msra.mxu0 0
  %475 = vmatprep.subr.bf16.mxu0 0
  %476 = vmatpush1.bf16.msra.mxu0 0
  %477 = vmatprep.subr.bf16.mxu0 0
  %478 = vmatpush1.bf16.msra.mxu0 0
  %479 = vmatprep.subr.bf16.mxu0 0
  %480 = vmatpush1.bf16.msra.mxu0 0
  %481 = vmatprep.subr.bf16.mxu0 0
  %482 = vmatpush1.bf16.msra.mxu0 0
  %483 = vmatprep.subr.bf16.mxu0 0
  %484 = vmatpush1.bf16.msra.mxu0 %v465
  %485 = vmatprep.subr.bf16.mxu0 0
  %486 = vmatpush1.bf16.msra.mxu0 %v464
  %487 = vmatprep.subr.bf16.mxu0 0
  %488 = vmatpush2.bf16.msra.mxu0 0
  %489 = vmatprep.subr.bf16.mxu0 0
  %490 = vmatpush2.bf16.msra.mxu0 0
  %491 = vmatprep.subr.bf16.mxu0 0
  %492 = vmatpush2.bf16.msra.mxu0 0
  %493 = vmatprep.subr.bf16.mxu0 0
  %494 = vmatpush2.bf16.msra.mxu0 0
  %495 = vmatprep.subr.bf16.mxu0 0
  %496 = vmatpush2.bf16.msra.mxu0 0
  %497 = vmatprep.subr.bf16.mxu0 0
  %498 = vmatpush2.bf16.msra.mxu0 0
  %499 = vmatprep.subr.bf16.mxu0 0
  %500 = vmatpush2.bf16.msra.mxu0 0
  %501 = vmatprep.subr.bf16.mxu0 0
  %502 = vmatpush2.bf16.msra.mxu0 0
  %503 = vmatprep.mubr.bf16.mxu0 0
  %504 = vmatmul.mubr.bf16.gmra.mxu0 %v469
  %v505 = vpop.f32.mrf.mxu0
  %v506 = vadd.f32 %v455, %v505
  %v507 = vpop.f32.mrf.mxu0
  %v508 = vpop.f32.mrf.mxu0
  %v509 = vpop.f32.mrf.mxu0
  %510 = vdwg.mxu0
  %v511 = vadd.f32 %v506, %v339
  %vm512 = vcmp.ge.f32.partialorder %v511, 0.0
  %v513 = vmul.f32 %v511, 0.01
  %v514 = vsel %vm512, %v511, %v513
  %v515 = vmul.f32 %v514, %v514
  %517 = vrot.lane.b32.xlu0 %v515, 32
  %v518 = vpop.permute.xlu0 %517
  %v520 = vsel %vm172, %v514, %v518
  %521 = vmatprep.subr.mxu0 0.0
  %522 = vmatpush1.msra.mxu0 0.0
  %523 = vmatprep.subr.mxu0 0.0
  %524 = vmatpush1.msra.mxu0 0.0
  %525 = vmatprep.subr.mxu0 0.0
  %526 = vmatpush1.msra.mxu0 0.0
  %527 = vmatprep.subr.mxu0 0.0
  %528 = vmatpush1.msra.mxu0 0.0
  %529 = vmatprep.subr.mxu0 0.0
  %530 = vmatpush1.msra.mxu0 0.0
  %531 = vmatprep.subr.mxu0 0.0
  %532 = vmatpush1.msra.mxu0 0.0
  %533 = vmatprep.subr.mxu0 0.0
  %534 = vmatpush1.msra.mxu0 0.0
  %535 = vmatprep.subr.mxu0 0.0
  %536 = vmatpush1.msra.mxu0 0.0
  %537 = vmatprep.subr.mxu0 0.0
  %538 = vmatpush1.msra.mxu0 0.0
  %539 = vmatprep.subr.mxu0 0.0
  %540 = vmatpush1.msra.mxu0 0.0
  %541 = vmatprep.subr.mxu0 0.0
  %542 = vmatpush1.msra.mxu0 0.0
  %543 = vmatprep.subr.mxu0 0.0
  %544 = vmatpush1.msra.mxu0 0.0
  %545 = vmatprep.subr.mxu0 0.0
  %546 = vmatpush1.msra.mxu0 0.0
  %547 = vmatprep.subr.mxu0 0.0
  %548 = vmatpush1.msra.mxu0 0.0
  %549 = vmatprep.subr.mxu0 0.0
  %550 = vmatpush1.msra.mxu0 0.0
  %551 = vmatprep.subr.mxu0 0.0
  %552 = vmatpush1.msra.mxu0 %v520
  %553 = vmatprep.subr.mxu0 0.0
  %554 = vmatpush2.msra.mxu0 0.0
  %555 = vmatprep.subr.mxu0 0.0
  %556 = vmatpush2.msra.mxu0 0.0
  %557 = vmatprep.subr.mxu0 0.0
  %558 = vmatpush2.msra.mxu0 0.0
  %559 = vmatprep.subr.mxu0 0.0
  %560 = vmatpush2.msra.mxu0 0.0
  %561 = vmatprep.subr.mxu0 0.0
  %562 = vmatpush2.msra.mxu0 0.0
  %563 = vmatprep.subr.mxu0 0.0
  %564 = vmatpush2.msra.mxu0 0.0
  %565 = vmatprep.subr.mxu0 0.0
  %566 = vmatpush2.msra.mxu0 0.0
  %567 = vmatprep.subr.mxu0 0.0
  %568 = vmatpush2.msra.mxu0 0.0
  %569 = vmatprep.subr.mxu0 0.0
  %570 = vmatpush2.msra.mxu0 0.0
  %571 = vmatprep.subr.mxu0 0.0
  %572 = vmatpush2.msra.mxu0 0.0
  %573 = vmatprep.subr.mxu0 0.0
  %574 = vmatpush2.msra.mxu0 0.0
  %575 = vmatprep.subr.mxu0 0.0
  %576 = vmatpush2.msra.mxu0 0.0
  %577 = vmatprep.subr.mxu0 0.0
  %578 = vmatpush2.msra.mxu0 0.0
  %579 = vmatprep.subr.mxu0 0.0
  %580 = vmatpush2.msra.mxu0 0.0
  %581 = vmatprep.subr.mxu0 0.0
  %582 = vmatpush2.msra.mxu0 0.0
  %583 = vmatprep.subr.mxu0 0.0
  %584 = vmatpush2.msra.mxu0 0.0
  %585 = vmatprep.mubr.f32.mxu0 0.0
  %586 = vmatmul.mubr.f32.gmra.mxu0 %v176
  %v587 = vpop.f32.mrf.mxu0
  %v588 = vadd.f32 0.0, %v587
  %v589 = vpop.f32.mrf.mxu0
  %590 = vdwg.mxu0
  %v591 = vmul.f32 %v588, %v588
  %593 = vrot.lane.b32.xlu0 %v591, 32
  %v594 = vpop.permute.xlu0 %593
  %v596 = vsub.f32 %v588, %v594
  %v597 = vadd.f32 %v596, 1e-05
  %v598 = vrsqrt.pop %v597
  %600 = vrot.lane.b32.xlu0 %v598, 96
  %v601 = vpop.permute.xlu0 %600
  %v603 = vmul.f32 %v26, %v601
  %v604 = vlaneseq
  %v605 = vshrl.u32 %v604, 7
  %v606 = vsub.s32 0, %v605
  %v607 = vrot.slane %v603, %v606
  %v608 = vmul.f32 %v514, %v607
  %v609 = vmul.f32 %v588, %v603
  %v610 = vsub.f32 %v30, %v609
  %v611 = vlaneseq
  %v612 = vshrl.u32 %v611, 7
  %v613 = vsub.s32 0, %v612
  %v614 = vrot.slane %v610, %v613
  %v615 = vadd.f32 %v608, %v614
  %s616 = scalar_lea.vmem %s3, 32
  %v617 = vld [vmem:[%s616] sm:$0xf]
  %v618 = vld [vmem:[%s616 + $0x4] sm:$0xf]
  %v619 = vld [vmem:[%s616 + $0x8] sm:$0xf]
  %v620 = vld [vmem:[%s616 + $0xc] sm:$0xf]
  %v621 = vpack.c.bf16 %v615, %v615
  %v622 = vlaneseq
  %v623 = vshrl.u32 %v622, 7
  %v624 = vsub.s32 0, %v623
  %v625 = vrot.slane %v23, %v624
  %v630 = vunpack.c.l.b16 %v617
  %v631 = vunpack.c.l.b16 %v618
  %v632 = vunpack.c.l.b16 %v619
  %v633 = vunpack.c.l.b16 %v620
  %v634 = vpack.c.b16 %v631, %v630
  %v635 = vpack.c.b16 %v633, %v632
  %v639 = vsel %vm172, %v621, 0
  %641 = vmatprep.subr.bf16.mxu0 0
  %642 = vmatpush1.bf16.msra.mxu0 0
  %643 = vmatprep.subr.bf16.mxu0 0
  %644 = vmatpush1.bf16.msra.mxu0 0
  %645 = vmatprep.subr.bf16.mxu0 0
  %646 = vmatpush1.bf16.msra.mxu0 0
  %647 = vmatprep.subr.bf16.mxu0 0
  %648 = vmatpush1.bf16.msra.mxu0 0
  %649 = vmatprep.subr.bf16.mxu0 0
  %650 = vmatpush1.bf16.msra.mxu0 0
  %651 = vmatprep.subr.bf16.mxu0 0
  %652 = vmatpush1.bf16.msra.mxu0 0
  %653 = vmatprep.subr.bf16.mxu0 0
  %654 = vmatpush1.bf16.msra.mxu0 %v635
  %655 = vmatprep.subr.bf16.mxu0 0
  %656 = vmatpush1.bf16.msra.mxu0 %v634
  %657 = vmatprep.subr.bf16.mxu0 0
  %658 = vmatpush2.bf16.msra.mxu0 0
  %659 = vmatprep.subr.bf16.mxu0 0
  %660 = vmatpush2.bf16.msra.mxu0 0
  %661 = vmatprep.subr.bf16.mxu0 0
  %662 = vmatpush2.bf16.msra.mxu0 0
  %663 = vmatprep.subr.bf16.mxu0 0
  %664 = vmatpush2.bf16.msra.mxu0 0
  %665 = vmatprep.subr.bf16.mxu0 0
  %666 = vmatpush2.bf16.msra.mxu0 0
  %667 = vmatprep.subr.bf16.mxu0 0
  %668 = vmatpush2.bf16.msra.mxu0 0
  %669 = vmatprep.subr.bf16.mxu0 0
  %670 = vmatpush2.bf16.msra.mxu0 0
  %671 = vmatprep.subr.bf16.mxu0 0
  %672 = vmatpush2.bf16.msra.mxu0 0
  %673 = vmatprep.mubr.bf16.mxu0 0
  %674 = vmatmul.mubr.bf16.gmra.mxu0 %v639
  %v675 = vpop.f32.mrf.mxu0
  %v676 = vadd.f32 %v625, %v675
  %v677 = vpop.f32.mrf.mxu0
  %v678 = vpop.f32.mrf.mxu0
  %v679 = vpop.f32.mrf.mxu0
  %680 = vdwg.mxu0
  %v681 = vadd.f32 %v676, %v272
  %vm682 = vcmp.ge.f32.partialorder %v681, 0.0
  %v683 = vmul.f32 %v681, 0.01
  %v684 = vsel %vm682, %v681, %v683
  %v685 = vmul.f32 %v684, %v684
  %687 = vrot.lane.b32.xlu0 %v685, 32
  %v688 = vpop.permute.xlu0 %687
  %v690 = vsel %vm172, %v684, %v688
  %691 = vmatprep.subr.mxu0 0.0
  %692 = vmatpush1.msra.mxu0 0.0
  %693 = vmatprep.subr.mxu0 0.0
  %694 = vmatpush1.msra.mxu0 0.0
  %695 = vmatprep.subr.mxu0 0.0
  %696 = vmatpush1.msra.mxu0 0.0
  %697 = vmatprep.subr.mxu0 0.0
  %698 = vmatpush1.msra.mxu0 0.0
  %699 = vmatprep.subr.mxu0 0.0
  %700 = vmatpush1.msra.mxu0 0.0
  %701 = vmatprep.subr.mxu0 0.0
  %702 = vmatpush1.msra.mxu0 0.0
  %703 = vmatprep.subr.mxu0 0.0
  %704 = vmatpush1.msra.mxu0 0.0
  %705 = vmatprep.subr.mxu0 0.0
  %706 = vmatpush1.msra.mxu0 0.0
  %707 = vmatprep.subr.mxu0 0.0
  %708 = vmatpush1.msra.mxu0 0.0
  %709 = vmatprep.subr.mxu0 0.0
  %710 = vmatpush1.msra.mxu0 0.0
  %711 = vmatprep.subr.mxu0 0.0
  %712 = vmatpush1.msra.mxu0 0.0
  %713 = vmatprep.subr.mxu0 0.0
  %714 = vmatpush1.msra.mxu0 0.0
  %715 = vmatprep.subr.mxu0 0.0
  %716 = vmatpush1.msra.mxu0 0.0
  %717 = vmatprep.subr.mxu0 0.0
  %718 = vmatpush1.msra.mxu0 0.0
  %719 = vmatprep.subr.mxu0 0.0
  %720 = vmatpush1.msra.mxu0 0.0
  %721 = vmatprep.subr.mxu0 0.0
  %722 = vmatpush1.msra.mxu0 %v690
  %723 = vmatprep.subr.mxu0 0.0
  %724 = vmatpush2.msra.mxu0 0.0
  %725 = vmatprep.subr.mxu0 0.0
  %726 = vmatpush2.msra.mxu0 0.0
  %727 = vmatprep.subr.mxu0 0.0
  %728 = vmatpush2.msra.mxu0 0.0
  %729 = vmatprep.subr.mxu0 0.0
  %730 = vmatpush2.msra.mxu0 0.0
  %731 = vmatprep.subr.mxu0 0.0
  %732 = vmatpush2.msra.mxu0 0.0
  %733 = vmatprep.subr.mxu0 0.0
  %734 = vmatpush2.msra.mxu0 0.0
  %735 = vmatprep.subr.mxu0 0.0
  %736 = vmatpush2.msra.mxu0 0.0
  %737 = vmatprep.subr.mxu0 0.0
  %738 = vmatpush2.msra.mxu0 0.0
  %739 = vmatprep.subr.mxu0 0.0
  %740 = vmatpush2.msra.mxu0 0.0
  %741 = vmatprep.subr.mxu0 0.0
  %742 = vmatpush2.msra.mxu0 0.0
  %743 = vmatprep.subr.mxu0 0.0
  %744 = vmatpush2.msra.mxu0 0.0
  %745 = vmatprep.subr.mxu0 0.0
  %746 = vmatpush2.msra.mxu0 0.0
  %747 = vmatprep.subr.mxu0 0.0
  %748 = vmatpush2.msra.mxu0 0.0
  %749 = vmatprep.subr.mxu0 0.0
  %750 = vmatpush2.msra.mxu0 0.0
  %751 = vmatprep.subr.mxu0 0.0
  %752 = vmatpush2.msra.mxu0 0.0
  %753 = vmatprep.subr.mxu0 0.0
  %754 = vmatpush2.msra.mxu0 0.0
  %755 = vmatprep.mubr.f32.mxu0 0.0
  %756 = vmatmul.mubr.f32.gmra.mxu0 %v176
  %v757 = vpop.f32.mrf.mxu0
  %v758 = vadd.f32 0.0, %v757
  %v759 = vpop.f32.mrf.mxu0
  %760 = vdwg.mxu0
  %v761 = vmul.f32 %v758, %v758
  %763 = vrot.lane.b32.xlu0 %v761, 32
  %v764 = vpop.permute.xlu0 %763
  %v766 = vsub.f32 %v758, %v764
  %v767 = vadd.f32 %v766, 1e-05
  %v768 = vrsqrt.pop %v767
  %770 = vrot.lane.b32.xlu0 %v768, 96
  %v771 = vpop.permute.xlu0 %770
  %v773 = vmul.f32 %v27, %v771
  %v774 = vlaneseq
  %v775 = vshrl.u32 %v774, 7
  %v776 = vsub.s32 0, %v775
  %v777 = vrot.slane %v773, %v776
  %v778 = vmul.f32 %v684, %v777
  %v779 = vmul.f32 %v758, %v773
  %v780 = vsub.f32 %v31, %v779
  %v781 = vlaneseq
  %v782 = vshrl.u32 %v781, 7
  %v783 = vsub.s32 0, %v782
  %v784 = vrot.slane %v780, %v783
  %v785 = vadd.f32 %v778, %v784
  %s786 = scalar_lea.vmem %s3, 48
  %v787 = vld [vmem:[%s786] sm:$0xf]
  %v788 = vld [vmem:[%s786 + $0x4] sm:$0xf]
  %v789 = vld [vmem:[%s786 + $0x8] sm:$0xf]
  %v790 = vld [vmem:[%s786 + $0xc] sm:$0xf]
  %v791 = vpack.c.bf16 %v785, %v785
  %v792 = vlaneseq
  %v793 = vshrl.u32 %v792, 7
  %v794 = vsub.s32 0, %v793
  %v795 = vrot.slane %v32, %v794
  %v800 = vunpack.c.l.b16 %v787
  %v801 = vunpack.c.l.b16 %v788
  %v802 = vunpack.c.l.b16 %v789
  %v803 = vunpack.c.l.b16 %v790
  %v804 = vpack.c.b16 %v801, %v800
  %v805 = vpack.c.b16 %v803, %v802
  %v809 = vsel %vm172, %v791, 0
  %811 = vmatprep.subr.bf16.mxu0 0
  %812 = vmatpush1.bf16.msra.mxu0 0
  %813 = vmatprep.subr.bf16.mxu0 0
  %814 = vmatpush1.bf16.msra.mxu0 0
  %815 = vmatprep.subr.bf16.mxu0 0
  %816 = vmatpush1.bf16.msra.mxu0 0
  %817 = vmatprep.subr.bf16.mxu0 0
  %818 = vmatpush1.bf16.msra.mxu0 0
  %819 = vmatprep.subr.bf16.mxu0 0
  %820 = vmatpush1.bf16.msra.mxu0 0
  %821 = vmatprep.subr.bf16.mxu0 0
  %822 = vmatpush1.bf16.msra.mxu0 0
  %823 = vmatprep.subr.bf16.mxu0 0
  %824 = vmatpush1.bf16.msra.mxu0 %v805
  %825 = vmatprep.subr.bf16.mxu0 0
  %826 = vmatpush1.bf16.msra.mxu0 %v804
  %827 = vmatprep.subr.bf16.mxu0 0
  %828 = vmatpush2.bf16.msra.mxu0 0
  %829 = vmatprep.subr.bf16.mxu0 0
  %830 = vmatpush2.bf16.msra.mxu0 0
  %831 = vmatprep.subr.bf16.mxu0 0
  %832 = vmatpush2.bf16.msra.mxu0 0
  %833 = vmatprep.subr.bf16.mxu0 0
  %834 = vmatpush2.bf16.msra.mxu0 0
  %835 = vmatprep.subr.bf16.mxu0 0
  %836 = vmatpush2.bf16.msra.mxu0 0
  %837 = vmatprep.subr.bf16.mxu0 0
  %838 = vmatpush2.bf16.msra.mxu0 0
  %839 = vmatprep.subr.bf16.mxu0 0
  %840 = vmatpush2.bf16.msra.mxu0 0
  %841 = vmatprep.subr.bf16.mxu0 0
  %842 = vmatpush2.bf16.msra.mxu0 0
  %843 = vmatprep.mubr.bf16.mxu0 0
  %844 = vmatmul.mubr.bf16.gmra.mxu0 %v809
  %v845 = vpop.f32.mrf.mxu0
  %v846 = vadd.f32 %v795, %v845
  %v847 = vpop.f32.mrf.mxu0
  %v848 = vpop.f32.mrf.mxu0
  %v849 = vpop.f32.mrf.mxu0
  %850 = vdwg.mxu0
  %vm851 = vcmask 31744
  %852 = vst.msk [vmem:[%s5] sm:$0xff] %vm851, %v846
  // Predicated region
  $region22: #{tpu_custom_call.1} parent=0 // pred_check
    _
  $region23: #{tpu_custom_call.1} parent=0 // pred_check_branch
    %854 = sbr.rel (0) target = $region25
  $region24: #{tpu_custom_call.1} parent=0 // pred_region
    _
  $region25: #{tpu_custom_call.1} parent=0 // pred_fallthru
    _
  // Predicated region
  $region26: #{tpu_custom_call.1} parent=0 // pred_check
    _
  $region27: #{tpu_custom_call.1} parent=0 // pred_check_branch
    %856 = sbr.rel (0) target = $region29
  $region28: #{tpu_custom_call.1} parent=0 // pred_region
    _
  $region29: #{tpu_custom_call.1} parent=0 // pred_fallthru
    _

</llo_original>
